<compile_context>
chip_gen: v7x
topology: tpu7x:2x2x1
jax: 0.10.0
libtpu: 0.0.40
codegen_flags: <defaults>
</compile_context>

<pallas_src>
import jax
import jax.numpy as jnp
from jax.experimental import pallas as pl
from jax.experimental.pallas import tpu as pltpu

_LANE = 128
_TB_TARGET = 16 * 1024        # batch-lanes per grid step (~0.7 MiB f32 / block)
_FAST_PATH_MAX_BATCH = 2048   # below this, a fused XLA elementwise kernel wins


def _round_up(v, m):
    return (v + m - 1) // m * m


def fused_affine_relu_kernel(xt_ref, x1t_ref, wt_ref, b_ref, o_ref):
    """out^T = relu(W_all^T @ cat(x, x1)^T + b_eff), batch on the lane axis.

    xt_ref  : (Kx, TB)  x transposed              (Kx = 2)
    x1t_ref : (K1, TB)  x1 transposed             (K1 = 3)
    wt_ref  : (N, K)    folded weight, transposed (N = 6, K = Kx + K1 = 5)
    b_ref   : (N, 1)    folded bias (column vector)
    o_ref   : (N, TB)   output block, transposed
    """
    wt = wt_ref[...]            # (N, K)
    xt = xt_ref[...]            # (Kx, TB)
    x1t = x1t_ref[...]          # (K1, TB)
    kx = xt.shape[0]
    k1 = x1t.shape[0]

    # Statically-unrolled VPU broadcast-FMA chain over the K = 5 contraction
    # elements.  The bias seeds the accumulator (no separate bias-add pass)
    # and the two inputs are concatenated implicitly by indexing both refs.
    # TODO(synk): a stride-0 sublane-broadcast load
    # (xt_ref[pl.ds(k, n_out, stride=0), :]) would fold the sublane broadcast
    # into the vld; kept as implicit jnp broadcasting for lowering robustness.
    acc = b_ref[...] + wt[:, 0:1] * xt[0:1, :]
    for k in range(1, kx):                              # static unroll
        acc = acc + wt[:, k:k + 1] * xt[k:k + 1, :]
    for k in range(k1):                                 # static unroll
        acc = acc + wt[:, kx + k:kx + k + 1] * x1t[k:k + 1, :]

    # ReLU + single store of a lane-dense (unmasked) block.
    o_ref[...] = jnp.maximum(acc, 0.0)


def init_params(key):
    """Deterministic parameters mimicking torch.nn.Linear default init."""
    k1, k2, k3, k4 = jax.random.split(key, 4)
    in1, out1 = 2, 4
    in2, out2 = 7, 6  # see TODO(synk) above
    lim1 = 1.0 / jnp.sqrt(in1)
    lim2 = 1.0 / jnp.sqrt(in2)
    w1 = jax.random.uniform(k1, (in1, out1), jnp.float32, -lim1, lim1)
    b1 = jax.random.uniform(k2, (out1,), jnp.float32, -lim1, lim1)
    w2 = jax.random.uniform(k3, (in2, out2), jnp.float32, -lim2, lim2)
    b2 = jax.random.uniform(k4, (out2,), jnp.float32, -lim2, lim2)
    return w1, b1, w2, b2


def fold_params(params):
    """One-time algebraic fold of fc1/fc2 into a single (5 -> 6) affine map."""
    w1, b1, w2, b2 = params
    hidden = w1.shape[1]                       # 4
    w2a, w2b = w2[:hidden, :], w2[hidden:, :]  # (4, 6), (3, 6)
    w_eff = w1 @ w2a                           # (2, 6): multiplies x
    b_eff = b1 @ w2a + b2                      # (6,)
    w_all = jnp.concatenate([w_eff, w2b], axis=0)   # (5, 6)
    return w_all.T, b_eff.reshape(-1, 1)       # (6, 5), (6, 1)


def model_forward(x, x1, folded_params, *, force_pallas=False,
                  transposed_output=False):
    """relu(cat(fc1(x), x1) @ W2 + b2), with fc1/fc2 folded into one affine map.

    Returns (B, 6) by default; set transposed_output=True to receive the
    lane-dense (6, B) layout and skip the final transpose (preferred when the
    consumer can accept it).
    """
    wt, b_col = folded_params                  # (N, K), (N, 1)
    n_out, k_total = wt.shape
    batch, kx = x.shape
    k1 = x1.shape[1]
    assert kx + k1 == k_total

    # Small-batch fast path: the custom-call boundary plus layout plumbing
    # cost several microseconds of fixed overhead; XLA's single fused kernel
    # is strictly faster at tiny batch sizes.
    if batch <= _FAST_PATH_MAX_BATCH and not force_pallas:
        xc = jnp.concatenate([x, x1], axis=1).astype(jnp.float32)
        out = jnp.maximum(xc @ wt.T + b_col[:, 0], 0.0)
        return out.T if transposed_output else out

    # Transposed, lane-dense layout: batch on the 128-lane axis.  x and x1
    # stay separate -- no concatenated copy is materialised in HBM.
    xt = x.T.astype(jnp.float32)               # (Kx, B)
    x1t = x1.T.astype(jnp.float32)             # (K1, B)

    # Batch-tile selection:
    #  * tiles large enough that per-step DMA hides the ~0.35 us grid-step
    #    overhead (kernel sits at the HBM roofline),
    #  * >= 2 grid steps whenever there is enough work so v7x's 2 TensorCores
    #    both get a share of the "parallel" batch axis,
    #  * double-buffered block footprint stays well under the 32 MiB scoped-
    #    VMEM default on every chip generation.
    bp128 = _round_up(batch, _LANE)
    if bp128 <= 2 * _LANE:
        tb = bp128
    elif bp128 <= 2 * _TB_TARGET:
        tb = _round_up(bp128 // 2, _LANE)      # exactly 2 blocks
    else:
        tb = _TB_TARGET
    bp = _round_up(bp128, tb)

    if bp != batch:
        pad = ((0, 0), (0, bp - batch))
        xt = jnp.pad(xt, pad)
        x1t = jnp.pad(x1t, pad)

    out_t = pl.pallas_call(
        fused_affine_relu_kernel,
        out_shape=jax.ShapeDtypeStruct((n_out, bp), jnp.float32),
        grid=(bp // tb,),
        in_specs=[
            pl.BlockSpec((kx, tb), lambda i: (0, i)),          # x^T, batch-tiled
            pl.BlockSpec((k1, tb), lambda i: (0, i)),          # x1^T, batch-tiled
            pl.BlockSpec((n_out, k_total), lambda i: (0, 0)),  # weight, resident
            pl.BlockSpec((n_out, 1), lambda i: (0, 0)),        # bias, resident
        ],
        out_specs=pl.BlockSpec((n_out, tb), lambda i: (0, i)),
        compiler_params=pltpu.CompilerParams(
            dimension_semantics=("parallel",)),
    )(xt, x1t, wt, b_col)

    out_t = out_t[:, :batch]                   # drop batch padding
    return out_t if transposed_output else out_t.T


def reference_forward(x, x1, params):
    w1, b1, w2, b2 = params
    h = x @ w1 + b1
    c = jnp.concatenate([h, x1], axis=1)
    return jnp.maximum(c @ w2 + b2, 0.0)


if __name__ == "__main__":
    key = jax.random.PRNGKey(0)
    k_x, k_x1, k_p, k_bx, k_bx1 = jax.random.split(key, 5)

    params = init_params(k_p)
    folded = fold_params(params)   # hoisted out of the per-call path

    # 1) Spec-sized inputs (B = 2), forced through the Pallas kernel so the
    #    kernel itself is exercised (default dispatch would take the
    #    small-batch jnp fast path at this size).
    x = jax.random.normal(k_x, (2, 2), jnp.float32)
    x1 = jax.random.normal(k_x1, (2, 3), jnp.float32)
    out = jax.block_until_ready(model_forward(x, x1, folded, force_pallas=True))
    ref = reference_forward(x, x1, params)
    assert out.shape == (2, 6)
    assert jnp.allclose(out, ref, atol=1e-5, rtol=1e-5), "pallas B=2 mismatch"

    #    Default dispatch (fast path) must agree as well.
    out_fast = jax.block_until_ready(model_forward(x, x1, folded))
    assert jnp.allclose(out_fast, ref, atol=1e-5, rtol=1e-5), "fast-path mismatch"

    # 2) Multi-block coverage: batch that is neither a multiple of 128 nor a
    #    single tile, so grid > 1, the index_map, padding and slicing are all
    #    validated (review correctness concern).
    bx = jax.random.normal(k_bx, (300, 2), jnp.float32)
    bx1 = jax.random.normal(k_bx1, (300, 3), jnp.float32)
    out_b = jax.block_until_ready(
        model_forward(bx, bx1, folded, force_pallas=True))
    ref_b = reference_forward(bx, bx1, params)
    assert out_b.shape == (300, 6)
    assert jnp.allclose(out_b, ref_b, atol=1e-5, rtol=1e-5), "pallas B=300 mismatch"

    print("KERNEL_OK")
</pallas_src>

<mosaic_0001>
module attributes {stable_mosaic.version = 11 : i64} {
  func.func @fused_affine_relu_kernel(%arg0: i32, %arg1: memref<2x128xf32, #tpu.memory_space<vmem>>, %arg2: memref<3x128xf32, #tpu.memory_space<vmem>>, %arg3: memref<6x5xf32, #tpu.memory_space<vmem>>, %arg4: memref<6x1xf32, #tpu.memory_space<vmem>>, %arg5: memref<6x128xf32, #tpu.memory_space<vmem>>) attributes {dimension_semantics = [#tpu.dimension_semantics<parallel>], iteration_bounds = array<i64: 1>, scalar_prefetch = 0 : i64, scratch_operands = 0 : i64, tpu.core_type = #tpu.core_type<tc>, window_params = [{transform_indices = @transform_0, window_bounds = array<i64: 2, 128>}, {transform_indices = @transform_1, window_bounds = array<i64: 3, 128>}, {pipeline_mode = #tpu.pipeline_mode<synchronous>, transform_indices = @transform_2, window_bounds = array<i64: 6, 5>}, {pipeline_mode = #tpu.pipeline_mode<synchronous>, transform_indices = @transform_3, window_bounds = array<i64: 6, 1>}, {transform_indices = @transform_4, window_bounds = array<i64: 6, 128>}]} {
    %c0 = arith.constant 0 : index
    %c0_0 = arith.constant 0 : index
    %0 = vector.load %arg3[%c0, %c0_0] : memref<6x5xf32, #tpu.memory_space<vmem>>, vector<6x5xf32>
    %c0_1 = arith.constant 0 : index
    %c0_2 = arith.constant 0 : index
    %1 = vector.load %arg1[%c0_1, %c0_2] : memref<2x128xf32, #tpu.memory_space<vmem>>, vector<2x128xf32>
    %c0_3 = arith.constant 0 : index
    %c0_4 = arith.constant 0 : index
    %2 = vector.load %arg2[%c0_3, %c0_4] : memref<3x128xf32, #tpu.memory_space<vmem>>, vector<3x128xf32>
    %c0_5 = arith.constant 0 : index
    %c0_6 = arith.constant 0 : index
    %3 = vector.load %arg4[%c0_5, %c0_6] : memref<6x1xf32, #tpu.memory_space<vmem>>, vector<6x1xf32>
    %4 = vector.extract_strided_slice %0 {offsets = [0, 0], sizes = [6, 1], strides = [1, 1]} : vector<6x5xf32> to vector<6x1xf32>
    %5 = vector.extract_strided_slice %1 {offsets = [0, 0], sizes = [1, 128], strides = [1, 1]} : vector<2x128xf32> to vector<1x128xf32>
    %6 = vector.broadcast %4 : vector<6x1xf32> to vector<6x128xf32>
    %7 = vector.broadcast %5 : vector<1x128xf32> to vector<6x128xf32>
    %8 = arith.mulf %6, %7 : vector<6x128xf32>
    %9 = vector.broadcast %3 : vector<6x1xf32> to vector<6x128xf32>
    %10 = arith.addf %9, %8 : vector<6x128xf32>
    %11 = vector.extract_strided_slice %0 {offsets = [0, 1], sizes = [6, 1], strides = [1, 1]} : vector<6x5xf32> to vector<6x1xf32>
    %12 = vector.extract_strided_slice %1 {offsets = [1, 0], sizes = [1, 128], strides = [1, 1]} : vector<2x128xf32> to vector<1x128xf32>
    %13 = vector.broadcast %11 : vector<6x1xf32> to vector<6x128xf32>
    %14 = vector.broadcast %12 : vector<1x128xf32> to vector<6x128xf32>
    %15 = arith.mulf %13, %14 : vector<6x128xf32>
    %16 = arith.addf %10, %15 : vector<6x128xf32>
    %17 = vector.extract_strided_slice %0 {offsets = [0, 2], sizes = [6, 1], strides = [1, 1]} : vector<6x5xf32> to vector<6x1xf32>
    %18 = vector.extract_strided_slice %2 {offsets = [0, 0], sizes = [1, 128], strides = [1, 1]} : vector<3x128xf32> to vector<1x128xf32>
    %19 = vector.broadcast %17 : vector<6x1xf32> to vector<6x128xf32>
    %20 = vector.broadcast %18 : vector<1x128xf32> to vector<6x128xf32>
    %21 = arith.mulf %19, %20 : vector<6x128xf32>
    %22 = arith.addf %16, %21 : vector<6x128xf32>
    %23 = vector.extract_strided_slice %0 {offsets = [0, 3], sizes = [6, 1], strides = [1, 1]} : vector<6x5xf32> to vector<6x1xf32>
    %24 = vector.extract_strided_slice %2 {offsets = [1, 0], sizes = [1, 128], strides = [1, 1]} : vector<3x128xf32> to vector<1x128xf32>
    %25 = vector.broadcast %23 : vector<6x1xf32> to vector<6x128xf32>
    %26 = vector.broadcast %24 : vector<1x128xf32> to vector<6x128xf32>
    %27 = arith.mulf %25, %26 : vector<6x128xf32>
    %28 = arith.addf %22, %27 : vector<6x128xf32>
    %29 = vector.extract_strided_slice %0 {offsets = [0, 4], sizes = [6, 1], strides = [1, 1]} : vector<6x5xf32> to vector<6x1xf32>
    %30 = vector.extract_strided_slice %2 {offsets = [2, 0], sizes = [1, 128], strides = [1, 1]} : vector<3x128xf32> to vector<1x128xf32>
    %31 = vector.broadcast %29 : vector<6x1xf32> to vector<6x128xf32>
    %32 = vector.broadcast %30 : vector<1x128xf32> to vector<6x128xf32>
    %33 = arith.mulf %31, %32 : vector<6x128xf32>
    %34 = arith.addf %28, %33 : vector<6x128xf32>
    %cst = arith.constant 0.000000e+00 : f32
    %35 = vector.broadcast %cst : f32 to vector<6x128xf32>
    %36 = arith.maximumf %34, %35 : vector<6x128xf32>
    %c0_7 = arith.constant 0 : index
    %c0_8 = arith.constant 0 : index
    %37 = vector.load %arg5[%c0_7, %c0_8] : memref<6x128xf32, #tpu.memory_space<vmem>>, vector<6x128xf32>
    tpu.vector_store %arg5[%c0_7, %c0_8], %36 {strides = array<i32>} : memref<6x128xf32, #tpu.memory_space<vmem>>, vector<6x128xf32>,
    return
  }
  func.func @transform_0(%arg0: i32) -> (i32, i32) {
    %c0_i32 = arith.constant 0 : i32
    %c0_i32_0 = arith.constant 0 : i32
    return %c0_i32, %arg0 : i32, i32
  }
  func.func @transform_1(%arg0: i32) -> (i32, i32) {
    %c0_i32 = arith.constant 0 : i32
    %c0_i32_0 = arith.constant 0 : i32
    return %c0_i32, %arg0 : i32, i32
  }
  func.func @transform_2(%arg0: i32) -> (i32, i32) {
    %c0_i32 = arith.constant 0 : i32
    %c0_i32_0 = arith.constant 0 : i32
    %c0_i32_1 = arith.constant 0 : i32
    return %c0_i32, %c0_i32_0 : i32, i32
  }
  func.func @transform_3(%arg0: i32) -> (i32, i32) {
    %c0_i32 = arith.constant 0 : i32
    %c0_i32_0 = arith.constant 0 : i32
    %c0_i32_1 = arith.constant 0 : i32
    return %c0_i32, %c0_i32_0 : i32, i32
  }
  func.func @transform_4(%arg0: i32) -> (i32, i32) {
    %c0_i32 = arith.constant 0 : i32
    %c0_i32_0 = arith.constant 0 : i32
    return %c0_i32, %arg0 : i32, i32
  }
}

</mosaic_0001>

<llo_original>
// kernel: tpu_custom_call.1
$region0: #{tpu_custom_call.1}
  #allocation0 [shape = 'u32[]', space=smem, size = 0x4, offset = 0x4, fixed_abs, tag = 'smem constant byte address 0x4 - core index']
  #allocation1 [shape = 'u32[144,128]{1,0:T(1,128)}', space=vmem, size = 0x12000, scoped, tag = 'internal scratch']
  %s0 = inlined_call_operand.vmem [shape: f32[2,128], index: 0, kind: input, shape index: {}]
  %s1 = inlined_call_operand.vmem [shape: f32[3,128], index: 1, kind: input, shape index: {}]
  %s2 = inlined_call_operand.vmem [shape: f32[6,5], index: 2, kind: input, shape index: {}]
  %s3 = inlined_call_operand.vmem [shape: f32[6,1], index: 3, kind: input, shape index: {}]
  %s4 = inlined_call_operand.hbm [shape: f32[6,128], index: 4, kind: output, shape index: {}]
  %s5 = sld [smem:[#allocation0]]
  $region26: #{tpu_custom_call.1} parent=0
    _
  %s7 = ssub.s32 1, %s5
  %s8 = scalar_select 0, %s7, %s5
  $region1: #{tpu_custom_call.1} parent=0
    #allocation2 [shape = 'u8[4096]{0}', space=vmem, size = 0x1000, scoped, tag = 'output window, operand 0, single buffered']
    #allocation3 [shape = 's32[1]{0}', space=sflag, size = 0x4, scoped, tag = 'scoped memory for tpu_custom_call.1']
    %9 = vsyncpa [#allocation3], 0
    // Predicated region
    $region2: #{tpu_custom_call.1} parent=1 // pred_check
      _
    $region3: #{tpu_custom_call.1} parent=1 // pred_check_branch
      %11 = sbr.rel (0) target = $region5
    $region4: #{tpu_custom_call.1} parent=1 // pred_region
      _
    $region5: #{tpu_custom_call.1} parent=1 // pred_fallthru
      _
    // Predicated region
    $region6: #{tpu_custom_call.1} parent=1 // pred_check
      _
    $region7: #{tpu_custom_call.1} parent=1 // pred_check_branch
      %13 = sbr.rel (0) target = $region9
    $region8: #{tpu_custom_call.1} parent=1 // pred_region
      _
    $region9: #{tpu_custom_call.1} parent=1 // pred_fallthru
      _
    // Predicated region
    $region10: #{tpu_custom_call.1} parent=1 // pred_check
      _
    $region11: #{tpu_custom_call.1} parent=1 // pred_check_branch
      %15 = sbr.rel (0) target = $region13
    $region12: #{tpu_custom_call.1} parent=1 // pred_region
      _
    $region13: #{tpu_custom_call.1} parent=1 // pred_fallthru
      _
    // Predicated region
    $region14: #{tpu_custom_call.1} parent=1 // pred_check
      _
    $region15: #{tpu_custom_call.1} parent=1 // pred_check_branch
      %17 = sbr.rel (0) target = $region17
    $region16: #{tpu_custom_call.1} parent=1 // pred_region
      _
    $region17: #{tpu_custom_call.1} parent=1 // pred_fallthru
      _
    %v18 = vld [vmem:[%s2] sm:$0x3f]
    %v19 = vld [vmem:[%s0] sm:$0x3]
    %v20 = vld [vmem:[%s1] sm:$0x7]
    %v21 = vld [vmem:[%s3] sm:$0x3f]
    %23 = vset.pattern.permute.xlu0 0
    %24 = vperm.xlu0 %23, %v18
    %v25 = vpop.permute.xlu0 %24
    %v27 = vlaneseq
    %v28 = vshrl.u32 %v27, 7
    %v29 = vsub.s32 0, %v28
    %v30 = vrot.slane %v19, %v29
    %v31 = vmul.f32 %v25, %v30
    %33 = vset.pattern.permute.xlu0 0
    %34 = vperm.xlu0 %33, %v21
    %v35 = vpop.permute.xlu0 %34
    %v37 = vadd.f32 %v35, %v31
    %38 = vset.pattern.permute.xlu0 1
    %39 = vperm.xlu0 %38, %v18
    %v40 = vpop.permute.xlu0 %39
    %v42 = vlaneseq
    %v43 = vshrl.u32 %v42, 7
    %v44 = vsub.s32 1, %v43
    %v45 = vrot.slane %v19, %v44
    %v46 = vmul.f32 %v40, %v45
    %v47 = vadd.f32 %v37, %v46
    %48 = vset.pattern.permute.xlu0 2
    %49 = vperm.xlu0 %48, %v18
    %v50 = vpop.permute.xlu0 %49
    %v52 = vlaneseq
    %v53 = vshrl.u32 %v52, 7
    %v54 = vsub.s32 0, %v53
    %v55 = vrot.slane %v20, %v54
    %v56 = vmul.f32 %v50, %v55
    %v57 = vadd.f32 %v47, %v56
    %58 = vset.pattern.permute.xlu0 3
    %59 = vperm.xlu0 %58, %v18
    %v60 = vpop.permute.xlu0 %59
    %v62 = vlaneseq
    %v63 = vshrl.u32 %v62, 7
    %v64 = vsub.s32 1, %v63
    %v65 = vrot.slane %v20, %v64
    %v66 = vmul.f32 %v60, %v65
    %v67 = vadd.f32 %v57, %v66
    %68 = vset.pattern.permute.xlu0 4
    %69 = vperm.xlu0 %68, %v18
    %v70 = vpop.permute.xlu0 %69
    %v72 = vlaneseq
    %v73 = vshrl.u32 %v72, 7
    %v74 = vsub.s32 2, %v73
    %v75 = vrot.slane %v20, %v74
    %v76 = vmul.f32 %v70, %v75
    %v77 = vadd.f32 %v67, %v76
    %v78 = vmax.f32 %v77, 0.0
    %79 = vst [vmem:[#allocation2] sm:$0x3f] %v78
    // Predicated region
    $region18: #{tpu_custom_call.1} parent=1 // pred_check
      _
    $region19: #{tpu_custom_call.1} parent=1 // pred_check_branch
      %81 = sbr.rel (0) target = $region21
    $region20: #{tpu_custom_call.1} parent=1 // pred_region
      %s83 = ssub.s32 128, 128
      %84 = vsyncadd [#allocation3], %s83
      %s86 = sshll.u32 [#allocation2], 4
      %s87 = int_to_ptr.vmem [resolvable:$true] %s86
      %89 = dma.vmem_to_hbm [thread:$0]  %s87, 128, %s4, [#allocation3]
    $region21: #{tpu_custom_call.1} parent=1 // pred_fallthru
      _
    // Predicated region
    $region22: #{tpu_custom_call.1} parent=1 // pred_check
      _
    $region23: #{tpu_custom_call.1} parent=1 // pred_check_branch
      %91 = sbr.rel (0) target = $region25
    $region24: #{tpu_custom_call.1} parent=1 // pred_region
      %92 = dma.done [#allocation3], 128
    $region25: #{tpu_custom_call.1} parent=1 // pred_fallthru
      _
    %93 = vsyncpa [#allocation3], 1

</llo_original>
